<compile_context>
chip_gen: v5e
topology: v5e:2x2
jax: 0.10.0
libtpu: 0.0.40
codegen_flags: <defaults>
</compile_context>

<pallas_src>
import jax
import jax.numpy as jnp
from jax.experimental import pallas as pl
from jax.experimental.pallas import tpu as pltpu

# ---- model hyper-params (mirroring the PyTorch script) ----------------------
m = 2          # embedding dim
n_step = 2     # context length
n_hidden = 2   # hidden size
n_class = 16   # vocabulary size (synthetic)
BATCH = 4      # number of context windows

# ---- TPU-friendly padded sizes ----------------------------------------------
NC_PAD = ((n_class + 127) // 128) * 128   # lane-dense logits (128)
H_PAD = 128                               # hidden block padded to a full lane tile
MAX_TILE_B = 256                          # batch-tile cap (fills MXU M-dim)
MATMUL_DTYPE = jnp.float32                # set jnp.bfloat16 on v6e/v7x when MXU-bound


def _round_up(x, k):
    return ((x + k - 1) // k) * k


def _choose_tile_b(B):
    """Pick the batch tile: as large as possible (<= MAX_TILE_B) to fill the MXU
    M-dim; for small batches aim for a grid of exactly 2 so both v7x TCs work."""
    b8 = _round_up(max(B, 1), 8)
    if b8 <= 8:
        return 8
    if b8 <= 2 * MAX_TILE_B:
        return min(MAX_TILE_B, _round_up(-(-b8 // 2), 8))   # grid == 2
    return MAX_TILE_B


# ---- Pallas kernel: fully fused NNLM forward --------------------------------
def nnlm_kernel(tok_ref, a1_ref, uw_ref, out_ref):
    # tok_ref: (TILE_B, n_step) int32 token ids
    # a1_ref : (n_step*n_class, NC_PAD + H_PAD) folded [emb -> (W|H)] weights + biases
    # uw_ref : (H_PAD, NC_PAD)  U weight (zero-padded), stored (in, out)
    # out_ref: (TILE_B, NC_PAD) padded logits
    tile_b = tok_ref.shape[0]
    tok = tok_ref[...]                                          # (TILE_B, n_step)

    # Per-step one-hot compare (no div/mod) + accumulating MXU pushes against
    # per-step A1 row slabs.  n_step == 2 -> tiny static unroll.
    cls_iota = jax.lax.broadcasted_iota(jnp.int32, (tile_b, n_class), 1)

    def step_dot(s):
        onehot_s = (tok[:, s:s + 1] == cls_iota).astype(a1_ref.dtype)
        return jnp.dot(onehot_s, a1_ref[s * n_class:(s + 1) * n_class, :],
                       preferred_element_type=jnp.float32)

    comb = step_dot(0)
    for s in range(1, n_step):
        comb = comb + step_dot(s)

    # Both slices are exact 128-lane tiles (no masked MXU tails / relayouts).
    xw = comb[:, :NC_PAD]              # x @ Ww + Ub   (Ub folded into A1)
    h = jnp.tanh(comb[:, NC_PAD:])     # tanh(x @ Hw + Hb); padded lanes stay 0

    # MXU push: hidden -> logits, plus residual W-path.
    out = xw + jnp.dot(h.astype(uw_ref.dtype), uw_ref[...],
                       preferred_element_type=jnp.float32)
    out_ref[...] = out.astype(out_ref.dtype)


# ---- one-time weight packing (do NOT repeat per call) ------------------------
def pack_params(params, dtype=MATMUL_DTYPE):
    """Pad + fuse the raw NNLM parameters into kernel-ready operands."""
    C, Hw, Hb, Ww, Uw, Ub = (params[k] for k in ("C", "Hw", "Hb", "Ww", "Uw", "Ub"))
    hp = jax.lax.Precision.HIGHEST

    # [Ww_pad | Hw_pad]: logits part first (lane-aligned slices in-kernel).
    hw_cat = jnp.zeros((n_step * m, NC_PAD + H_PAD), jnp.float32)
    hw_cat = hw_cat.at[:, :n_class].set(Ww)
    hw_cat = hw_cat.at[:, NC_PAD:NC_PAD + n_hidden].set(Hw)

    # Fold the embedding table through the first layer:
    #   A1[s*n_class + c, :] = C[c, :] @ hw_cat[s*m:(s+1)*m, :]
    # Exact, because the in-kernel one-hot matmul is an exact row selection.
    A1 = jnp.concatenate(
        [jnp.dot(C, hw_cat[s * m:(s + 1) * m, :], precision=hp) for s in range(n_step)],
        axis=0)                                            # (n_step*n_class, NC_PAD+H_PAD)

    # Fold biases, distributed over the n_step selected rows (exact for n_step=2).
    bias_row = jnp.zeros((1, NC_PAD + H_PAD), jnp.float32)
    bias_row = bias_row.at[:, :n_class].set(Ub / n_step)
    bias_row = bias_row.at[:, NC_PAD:NC_PAD + n_hidden].set(Hb / n_step)
    A1 = A1 + bias_row

    Uw_p = jnp.zeros((H_PAD, NC_PAD), jnp.float32).at[:n_hidden, :n_class].set(Uw)
    # NOTE: A1 scales as n_step*V*(V_pad+H_PAD); for large vocab (>~2k on v7x's
    # 64 MiB VMEM) stream A1 row-blocks over an "arbitrary" K axis instead.
    return A1.astype(dtype), Uw_p.astype(dtype)


# ---- wrapper -----------------------------------------------------------------
def nnlm_forward(tokens, packed):
    """tokens: (B, n_step) int32 indices.  Returns (B, n_class) float32 logits."""
    A1, Uw_p = packed
    B = tokens.shape[0]
    tile_b = _choose_tile_b(B)
    B_pad = _round_up(max(B, tile_b), tile_b)
    tok_p = jnp.zeros((B_pad, n_step), jnp.int32).at[:B].set(tokens)

    out_pad = pl.pallas_call(
        nnlm_kernel,
        out_shape=jax.ShapeDtypeStruct((B_pad, NC_PAD), jnp.float32),
        grid_spec=pltpu.PrefetchScalarGridSpec(
            num_scalar_prefetch=0,
            grid=(B_pad // tile_b,),
            in_specs=[
                # only tokens stream with the batch grid ...
                pl.BlockSpec((tile_b, n_step), lambda i: (i, 0)),
                # ... weights stay VMEM-resident (constant index maps)
                pl.BlockSpec(A1.shape, lambda i: (0, 0)),
                pl.BlockSpec(Uw_p.shape, lambda i: (0, 0)),
            ],
            out_specs=pl.BlockSpec((tile_b, NC_PAD), lambda i: (i, 0)),
        ),
        compiler_params=pltpu.CompilerParams(
            dimension_semantics=("parallel",)),   # megacore / v7x 2-TC sharding over batch
    )(tok_p, A1, Uw_p)

    # Strip batch + vocab padding (padded logit columns / rows are never used;
    # never feed the padded slab to a downstream softmax/loss).
    return out_pad[:B, :n_class]


# ---- init + pure-JAX reference ------------------------------------------------
def init_params(key):
    """Deterministic N(0,1) init matching NNLM._init_parameter (+ Embedding init)."""
    ks = jax.random.split(key, 6)
    return {
        "C":  jax.random.normal(ks[0], (n_class, m), jnp.float32),
        # Linear weights stored pre-transposed: (in_features, out_features)
        "Hw": jax.random.normal(ks[1], (n_step * m, n_hidden), jnp.float32),
        "Hb": jax.random.normal(ks[2], (1, n_hidden), jnp.float32),
        "Ww": jax.random.normal(ks[3], (n_step * m, n_class), jnp.float32),
        "Uw": jax.random.normal(ks[4], (n_hidden, n_class), jnp.float32),
        "Ub": jax.random.normal(ks[5], (1, n_class), jnp.float32),
    }


def nnlm_reference(tokens, params):
    """Pure-JAX reference of the PyTorch forward (full f32 precision)."""
    hp = jax.lax.Precision.HIGHEST
    x = jnp.take(params["C"], tokens, axis=0).reshape(tokens.shape[0], n_step * m)
    h = jnp.tanh(jnp.dot(x, params["Hw"], precision=hp) + params["Hb"])
    return (jnp.dot(x, params["Ww"], precision=hp)
            + jnp.dot(h, params["Uw"], precision=hp) + params["Ub"])


if __name__ == "__main__":
    key = jax.random.PRNGKey(0)
    pkey, tkey, tkey2 = jax.random.split(key, 3)

    params = init_params(pkey)
    packed = pack_params(params)          # one-time weight fusion/padding

    # Small batch (matches the PyTorch tutorial).
    tokens = jax.random.randint(tkey, (BATCH, n_step), 0, n_class, dtype=jnp.int32)
    out = jax.block_until_ready(nnlm_forward(tokens, packed))
    ref = nnlm_reference(tokens, params)
    assert out.shape == (BATCH, n_class)
    assert jnp.allclose(out, ref, atol=1e-3, rtol=1e-3), float(jnp.max(jnp.abs(out - ref)))

    # Second run exercising a multi-step (grid == 2) batch with padded tail rows.
    tokens2 = jax.random.randint(tkey2, (20, n_step), 0, n_class, dtype=jnp.int32)
    out2 = jax.block_until_ready(nnlm_forward(tokens2, packed))
    ref2 = nnlm_reference(tokens2, params)
    assert out2.shape == (20, n_class)
    assert jnp.allclose(out2, ref2, atol=1e-3, rtol=1e-3), float(jnp.max(jnp.abs(out2 - ref2)))

    print("KERNEL_OK")
</pallas_src>

<mosaic_0001>
module attributes {stable_mosaic.version = 11 : i64} {
  func.func @nnlm_kernel(%arg0: i32, %arg1: memref<8x2xi32, #tpu.memory_space<vmem>>, %arg2: memref<32x256xf32, #tpu.memory_space<vmem>>, %arg3: memref<128x128xf32, #tpu.memory_space<vmem>>, %arg4: memref<8x128xf32, #tpu.memory_space<vmem>>) attributes {dimension_semantics = [#tpu.dimension_semantics<parallel>], iteration_bounds = array<i64: 1>, scalar_prefetch = 0 : i64, scratch_operands = 0 : i64, tpu.core_type = #tpu.core_type<tc>, window_params = [{transform_indices = @transform_0, window_bounds = array<i64: 8, 2>}, {pipeline_mode = #tpu.pipeline_mode<synchronous>, transform_indices = @transform_1, window_bounds = array<i64: 32, 256>}, {pipeline_mode = #tpu.pipeline_mode<synchronous>, transform_indices = @transform_2, window_bounds = array<i64: 128, 128>}, {transform_indices = @transform_3, window_bounds = array<i64: 8, 128>}]} {
    %c0 = arith.constant 0 : index
    %c0_0 = arith.constant 0 : index
    %0 = vector.load %arg1[%c0, %c0_0] : memref<8x2xi32, #tpu.memory_space<vmem>>, vector<8x2xi32>
    %1 = tpu.iota {dimensions = array<i32: 1>} : vector<8x16xi32>
    %2 = vector.extract_strided_slice %0 {offsets = [0, 0], sizes = [8, 1], strides = [1, 1]} : vector<8x2xi32> to vector<8x1xi32>
    %3 = vector.broadcast %2 : vector<8x1xi32> to vector<8x16xi32>
    %4 = arith.cmpi eq, %3, %1 : vector<8x16xi32>
    %5 = arith.extui %4 : vector<8x16xi1> to vector<8x16xi32>
    %6 = arith.sitofp %5 : vector<8x16xi32> to vector<8x16xf32>
    %c0_1 = arith.constant 0 : index
    %c0_2 = arith.constant 0 : index
    %7 = vector.load %arg2[%c0_1, %c0_2] : memref<32x256xf32, #tpu.memory_space<vmem>>, vector<16x256xf32>
    %cst = arith.constant dense<0.000000e+00> : vector<8x256xf32>
    %8 = tpu.matmul %6, %7, %cst {dimension_numbers = #tpu.dot_dimension_numbers<[1], [0], [0], [1], [0, 0, 1, 1], [], []>} : vector<8x16xf32>, vector<16x256xf32>, vector<8x256xf32> -> vector<8x256xf32>
    %9 = vector.extract_strided_slice %0 {offsets = [0, 1], sizes = [8, 1], strides = [1, 1]} : vector<8x2xi32> to vector<8x1xi32>
    %10 = vector.broadcast %9 : vector<8x1xi32> to vector<8x16xi32>
    %11 = arith.cmpi eq, %10, %1 : vector<8x16xi32>
    %12 = arith.extui %11 : vector<8x16xi1> to vector<8x16xi32>
    %13 = arith.sitofp %12 : vector<8x16xi32> to vector<8x16xf32>
    %c16 = arith.constant 16 : index
    %c0_3 = arith.constant 0 : index
    %14 = vector.load %arg2[%c16, %c0_3] : memref<32x256xf32, #tpu.memory_space<vmem>>, vector<16x256xf32>
    %cst_4 = arith.constant dense<0.000000e+00> : vector<8x256xf32>
    %15 = tpu.matmul %13, %14, %cst_4 {dimension_numbers = #tpu.dot_dimension_numbers<[1], [0], [0], [1], [0, 0, 1, 1], [], []>} : vector<8x16xf32>, vector<16x256xf32>, vector<8x256xf32> -> vector<8x256xf32>
    %16 = arith.addf %8, %15 : vector<8x256xf32>
    %17 = vector.extract_strided_slice %16 {offsets = [0, 0], sizes = [8, 128], strides = [1, 1]} : vector<8x256xf32> to vector<8x128xf32>
    %18 = vector.extract_strided_slice %16 {offsets = [0, 128], sizes = [8, 128], strides = [1, 1]} : vector<8x256xf32> to vector<8x128xf32>
    %19 = math.tanh %18 : vector<8x128xf32>
    %c0_5 = arith.constant 0 : index
    %c0_6 = arith.constant 0 : index
    %20 = vector.load %arg3[%c0_5, %c0_6] : memref<128x128xf32, #tpu.memory_space<vmem>>, vector<128x128xf32>
    %cst_7 = arith.constant dense<0.000000e+00> : vector<8x128xf32>
    %21 = tpu.matmul %19, %20, %cst_7 {dimension_numbers = #tpu.dot_dimension_numbers<[1], [0], [0], [1], [0, 0, 1, 1], [], []>} : vector<8x128xf32>, vector<128x128xf32>, vector<8x128xf32> -> vector<8x128xf32>
    %22 = arith.addf %17, %21 : vector<8x128xf32>
    %c0_8 = arith.constant 0 : index
    %c0_9 = arith.constant 0 : index
    %23 = vector.load %arg4[%c0_8, %c0_9] : memref<8x128xf32, #tpu.memory_space<vmem>>, vector<8x128xf32>
    tpu.vector_store %arg4[%c0_8, %c0_9], %22 {strides = array<i32>} : memref<8x128xf32, #tpu.memory_space<vmem>>, vector<8x128xf32>,
    return
  }
  func.func @transform_0(%arg0: i32) -> (i32, i32) {
    %c0_i32 = arith.constant 0 : i32
    %c0_i32_0 = arith.constant 0 : i32
    return %arg0, %c0_i32 : i32, i32
  }
  func.func @transform_1(%arg0: i32) -> (i32, i32) {
    %c0_i32 = arith.constant 0 : i32
    %c0_i32_0 = arith.constant 0 : i32
    %c0_i32_1 = arith.constant 0 : i32
    return %c0_i32, %c0_i32_0 : i32, i32
  }
  func.func @transform_2(%arg0: i32) -> (i32, i32) {
    %c0_i32 = arith.constant 0 : i32
    %c0_i32_0 = arith.constant 0 : i32
    %c0_i32_1 = arith.constant 0 : i32
    return %c0_i32, %c0_i32_0 : i32, i32
  }
  func.func @transform_3(%arg0: i32) -> (i32, i32) {
    %c0_i32 = arith.constant 0 : i32
    %c0_i32_0 = arith.constant 0 : i32
    return %arg0, %c0_i32 : i32, i32
  }
}

</mosaic_0001>

<llo_original>
// kernel: tpu_custom_call.1
$region0: #{tpu_custom_call.1}
  #allocation0 [shape = 'u32[]', space=smem, size = 0x4, offset = 0x4, fixed_abs, tag = 'smem constant byte address 0x4 - core index']
  #allocation1 [shape = 'u32[72,128]{1,0:T(1,128)}', space=vmem, size = 0x9000, scoped, tag = 'internal scratch']
  %s0 = inlined_call_operand.vmem [shape: s32[8,2], index: 0, kind: input, shape index: {}]
  %s1 = inlined_call_operand.hbm [shape: f32[32,256], index: 1, kind: input, shape index: {}]
  %s2 = inlined_call_operand.hbm [shape: f32[128,128], index: 2, kind: input, shape index: {}]
  %s3 = inlined_call_operand.hbm [shape: f32[8,128], index: 3, kind: output, shape index: {}]
  %s4 = sld [smem:[#allocation0]]
  $region30: #{tpu_custom_call.1} parent=0
    _
  %s6 = ssub.s32 1, %s4
  %s7 = scalar_select 0, %s6, %s4
  $region1: #{tpu_custom_call.1} parent=0
    #allocation2 [shape = 'u8[32768]{0}', space=vmem, size = 0x8000, scoped, tag = 'input window, operand 1, single buffered']
    #allocation3 [shape = 's32[1]{0}', space=sflag, size = 0x4, scoped, tag = 'scoped memory for tpu_custom_call.1']
    #allocation4 [shape = 's32[1]{0}', space=sflag, size = 0x4, scoped, tag = 'scoped memory for tpu_custom_call.1']
    #allocation5 [shape = 'u8[65536]{0}', space=vmem, size = 0x10000, scoped, tag = 'input window, operand 2, single buffered']
    #allocation6 [shape = 's32[1]{0}', space=sflag, size = 0x4, scoped, tag = 'scoped memory for tpu_custom_call.1']
    #allocation7 [shape = 'u8[4096]{0}', space=vmem, size = 0x1000, scoped, tag = 'output window, operand 0, single buffered']
    %8 = vsyncpa [#allocation3], 0
    %9 = vsyncpa [#allocation6], 0
    %10 = vsyncpa [#allocation4], 0
    // Predicated region
    $region2: #{tpu_custom_call.1} parent=1 // pred_check
      _
    $region3: #{tpu_custom_call.1} parent=1 // pred_check_branch
      %12 = sbr.rel (0) target = $region5
    $region4: #{tpu_custom_call.1} parent=1 // pred_region
      _
    $region5: #{tpu_custom_call.1} parent=1 // pred_fallthru
      _
    // Predicated region
    $region6: #{tpu_custom_call.1} parent=1 // pred_check
      _
    $region7: #{tpu_custom_call.1} parent=1 // pred_check_branch
      %14 = sbr.rel (0) target = $region9
    $region8: #{tpu_custom_call.1} parent=1 // pred_region
      %16 = vsyncadd [#allocation3], 0
      %s17 = sshll.u32 %s1, 4
      %s18 = int_to_ptr.hbm [resolvable:$true] %s17
      %s19 = sshll.u32 [#allocation2], 4
      %s20 = int_to_ptr.vmem [resolvable:$true] %s19
      %25 = dma.hbm_to_vmem [thread:$0]  %s18, 1024, %s20, [#allocation3], 256, 256, 16
    $region9: #{tpu_custom_call.1} parent=1 // pred_fallthru
      _
    // Predicated region
    $region10: #{tpu_custom_call.1} parent=1 // pred_check
      _
    $region11: #{tpu_custom_call.1} parent=1 // pred_check_branch
      %27 = sbr.rel (0) target = $region13
    $region12: #{tpu_custom_call.1} parent=1 // pred_region
      %29 = vsyncadd [#allocation6], 0
      %s30 = sshll.u32 %s2, 4
      %s31 = int_to_ptr.hbm [resolvable:$true] %s30
      %s32 = sshll.u32 [#allocation5], 4
      %s33 = int_to_ptr.vmem [resolvable:$true] %s32
      %38 = dma.hbm_to_vmem [thread:$0]  %s31, 2048, %s33, [#allocation6], 128, 128, 8
    $region13: #{tpu_custom_call.1} parent=1 // pred_fallthru
      _
    // Predicated region
    $region14: #{tpu_custom_call.1} parent=1 // pred_check
      _
    $region15: #{tpu_custom_call.1} parent=1 // pred_check_branch
      %40 = sbr.rel (0) target = $region17
    $region16: #{tpu_custom_call.1} parent=1 // pred_region
      %42 = dma.done [#allocation3], 1024
    $region17: #{tpu_custom_call.1} parent=1 // pred_fallthru
      _
    // Predicated region
    $region18: #{tpu_custom_call.1} parent=1 // pred_check
      _
    $region19: #{tpu_custom_call.1} parent=1 // pred_check_branch
      %44 = sbr.rel (0) target = $region21
    $region20: #{tpu_custom_call.1} parent=1 // pred_region
      %46 = dma.done [#allocation6], 2048
    $region21: #{tpu_custom_call.1} parent=1 // pred_fallthru
      _
    %v47 = vld [vmem:[%s0] sm:$0xff]
    %v48 = vlaneseq
    %v49 = vand.u32 %v48, 127
    %50 = vset.pattern.permute.xlu0 0
    %51 = vperm.xlu0 %50, %v47
    %v52 = vpop.permute.xlu0 %51
    %vm53 = vcmp.eq.s32.totalorder %v52, %v49
    %v54 = vsel %vm53, 1, 0
    %v55 = vcvt.s32.f32 %v54
    %v56 = vld [vmem:[#allocation2] sm:$0xff]
    %v57 = vld [vmem:[#allocation2 + $0x8] sm:$0xff]
    %v58 = vld [vmem:[#allocation2 + $0x10] sm:$0xff]
    %v59 = vld [vmem:[#allocation2 + $0x18] sm:$0xff]
    %60 = vset.pattern.permute.xlu0 1
    %61 = vperm.xlu0 %60, %v47
    %v62 = vpop.permute.xlu0 %61
    %vm63 = vcmp.eq.s32.totalorder %v62, %v49
    %v64 = vsel %vm63, 1, 0
    %v65 = vcvt.s32.f32 %v64
    %v66 = vld [vmem:[#allocation2 + $0x20] sm:$0xff]
    %v67 = vld [vmem:[#allocation2 + $0x28] sm:$0xff]
    %v68 = vld [vmem:[#allocation2 + $0x30] sm:$0xff]
    %v69 = vld [vmem:[#allocation2 + $0x38] sm:$0xff]
    %vm70 = vcmask 130048
    %v72 = vsel %vm70, %v65, 0
    %74 = vmatpush.msra.mxu0 0.0
    %75 = vmatpush.msra.mxu0 0.0
    %76 = vmatpush.msra.mxu0 0.0
    %77 = vmatpush.msra.mxu0 0.0
    %78 = vmatpush.msra.mxu0 0.0
    %79 = vmatpush.msra.mxu0 0.0
    %80 = vmatpush.msra.mxu0 0.0
    %81 = vmatpush.msra.mxu0 0.0
    %82 = vmatpush.msra.mxu0 0.0
    %83 = vmatpush.msra.mxu0 0.0
    %84 = vmatpush.msra.mxu0 0.0
    %85 = vmatpush.msra.mxu0 0.0
    %86 = vmatpush.msra.mxu0 0.0
    %87 = vmatpush.msra.mxu0 0.0
    %88 = vmatpush.msra.mxu0 %v68
    %89 = vmatpush.msra.mxu0 %v66
    %90 = vmatmul.f32.gmra.mxu0 %v72
    %v91 = vpop.f32.mrf.mxu0
    %v92 = vadd.f32 0.0, %v91
    %93 = vdwg.mxu0
    %94 = vmatpush.msra.mxu0 0.0
    %95 = vmatpush.msra.mxu0 0.0
    %96 = vmatpush.msra.mxu0 0.0
    %97 = vmatpush.msra.mxu0 0.0
    %98 = vmatpush.msra.mxu0 0.0
    %99 = vmatpush.msra.mxu0 0.0
    %100 = vmatpush.msra.mxu0 0.0
    %101 = vmatpush.msra.mxu0 0.0
    %102 = vmatpush.msra.mxu0 0.0
    %103 = vmatpush.msra.mxu0 0.0
    %104 = vmatpush.msra.mxu0 0.0
    %105 = vmatpush.msra.mxu0 0.0
    %106 = vmatpush.msra.mxu0 0.0
    %107 = vmatpush.msra.mxu0 0.0
    %108 = vmatpush.msra.mxu0 %v69
    %109 = vmatpush.msra.mxu0 %v67
    %110 = vmatmul.f32.gmra.mxu0 %v72
    %v111 = vpop.f32.mrf.mxu0
    %v112 = vadd.f32 0.0, %v111
    %113 = vdwg.mxu0
    %v115 = vsel %vm70, %v55, 0
    %117 = vmatpush.msra.mxu0 0.0
    %118 = vmatpush.msra.mxu0 0.0
    %119 = vmatpush.msra.mxu0 0.0
    %120 = vmatpush.msra.mxu0 0.0
    %121 = vmatpush.msra.mxu0 0.0
    %122 = vmatpush.msra.mxu0 0.0
    %123 = vmatpush.msra.mxu0 0.0
    %124 = vmatpush.msra.mxu0 0.0
    %125 = vmatpush.msra.mxu0 0.0
    %126 = vmatpush.msra.mxu0 0.0
    %127 = vmatpush.msra.mxu0 0.0
    %128 = vmatpush.msra.mxu0 0.0
    %129 = vmatpush.msra.mxu0 0.0
    %130 = vmatpush.msra.mxu0 0.0
    %131 = vmatpush.msra.mxu0 %v58
    %132 = vmatpush.msra.mxu0 %v56
    %133 = vmatmul.f32.gmra.mxu0 %v115
    %v134 = vpop.f32.mrf.mxu0
    %v135 = vadd.f32 %v92, %v134
    %136 = vdwg.mxu0
    %137 = vmatpush.msra.mxu0 0.0
    %138 = vmatpush.msra.mxu0 0.0
    %139 = vmatpush.msra.mxu0 0.0
    %140 = vmatpush.msra.mxu0 0.0
    %141 = vmatpush.msra.mxu0 0.0
    %142 = vmatpush.msra.mxu0 0.0
    %143 = vmatpush.msra.mxu0 0.0
    %144 = vmatpush.msra.mxu0 0.0
    %145 = vmatpush.msra.mxu0 0.0
    %146 = vmatpush.msra.mxu0 0.0
    %147 = vmatpush.msra.mxu0 0.0
    %148 = vmatpush.msra.mxu0 0.0
    %149 = vmatpush.msra.mxu0 0.0
    %150 = vmatpush.msra.mxu0 0.0
    %151 = vmatpush.msra.mxu0 %v59
    %152 = vmatpush.msra.mxu0 %v57
    %153 = vmatmul.f32.gmra.mxu0 %v115
    %v154 = vpop.f32.mrf.mxu0
    %v155 = vadd.f32 %v112, %v154
    %156 = vdwg.mxu0
    %v157 = vtanh.pop %v155
    %v158 = vld [vmem:[#allocation5] sm:$0xff]
    %v159 = vld [vmem:[#allocation5 + $0x8] sm:$0xff]
    %v160 = vld [vmem:[#allocation5 + $0x10] sm:$0xff]
    %v161 = vld [vmem:[#allocation5 + $0x18] sm:$0xff]
    %v162 = vld [vmem:[#allocation5 + $0x20] sm:$0xff]
    %v163 = vld [vmem:[#allocation5 + $0x28] sm:$0xff]
    %v164 = vld [vmem:[#allocation5 + $0x30] sm:$0xff]
    %v165 = vld [vmem:[#allocation5 + $0x38] sm:$0xff]
    %v166 = vld [vmem:[#allocation5 + $0x40] sm:$0xff]
    %v167 = vld [vmem:[#allocation5 + $0x48] sm:$0xff]
    %v168 = vld [vmem:[#allocation5 + $0x50] sm:$0xff]
    %v169 = vld [vmem:[#allocation5 + $0x58] sm:$0xff]
    %v170 = vld [vmem:[#allocation5 + $0x60] sm:$0xff]
    %v171 = vld [vmem:[#allocation5 + $0x68] sm:$0xff]
    %v172 = vld [vmem:[#allocation5 + $0x70] sm:$0xff]
    %v173 = vld [vmem:[#allocation5 + $0x78] sm:$0xff]
    %174 = vmatpush.msra.mxu0 %v173
    %175 = vmatpush.msra.mxu0 %v172
    %176 = vmatpush.msra.mxu0 %v171
    %177 = vmatpush.msra.mxu0 %v170
    %178 = vmatpush.msra.mxu0 %v169
    %179 = vmatpush.msra.mxu0 %v168
    %180 = vmatpush.msra.mxu0 %v167
    %181 = vmatpush.msra.mxu0 %v166
    %182 = vmatpush.msra.mxu0 %v165
    %183 = vmatpush.msra.mxu0 %v164
    %184 = vmatpush.msra.mxu0 %v163
    %185 = vmatpush.msra.mxu0 %v162
    %186 = vmatpush.msra.mxu0 %v161
    %187 = vmatpush.msra.mxu0 %v160
    %188 = vmatpush.msra.mxu0 %v159
    %189 = vmatpush.msra.mxu0 %v158
    %190 = vmatmul.f32.gmra.mxu0 %v157
    %v191 = vpop.f32.mrf.mxu0
    %v192 = vadd.f32 0.0, %v191
    %193 = vdwg.mxu0
    %v194 = vadd.f32 %v135, %v192
    %195 = vst [vmem:[#allocation7] sm:$0xff] %v194
    // Predicated region
    $region22: #{tpu_custom_call.1} parent=1 // pred_check
      _
    $region23: #{tpu_custom_call.1} parent=1 // pred_check_branch
      %197 = sbr.rel (0) target = $region25
    $region24: #{tpu_custom_call.1} parent=1 // pred_region
      %199 = vsyncadd [#allocation4], 0
      %s201 = sshll.u32 [#allocation7], 4
      %s202 = int_to_ptr.vmem [resolvable:$true] %s201
      %s203 = sshll.u32 %s3, 4
      %s204 = int_to_ptr.hbm [resolvable:$true] %s203
      %206 = dma.vmem_to_hbm [thread:$0]  %s202, 128, %s204, [#allocation4]
    $region25: #{tpu_custom_call.1} parent=1 // pred_fallthru
      _
    // Predicated region
    $region26: #{tpu_custom_call.1} parent=1 // pred_check
      _
    $region27: #{tpu_custom_call.1} parent=1 // pred_check_branch
      %208 = sbr.rel (0) target = $region29
    $region28: #{tpu_custom_call.1} parent=1 // pred_region
      %210 = dma.done [#allocation4], 128
    $region29: #{tpu_custom_call.1} parent=1 // pred_fallthru
      _
    %211 = vsyncpa [#allocation3], 1
    %212 = vsyncpa [#allocation6], 1
    %213 = vsyncpa [#allocation4], 1

</llo_original>
